<compile_context>
chip_gen: v7x
topology: tpu7x:2x2x1
jax: 0.10.0
libtpu: 0.0.40
codegen_flags: <defaults>
</compile_context>

<pallas_src>
import functools
import math

import jax
import jax.numpy as jnp
from jax.experimental import pallas as pl
from jax.experimental.pallas import tpu as pltpu


_LANE = 128
_SUBLANE = 8


def _round_up(x: int, m: int) -> int:
    return ((x + m - 1) // m) * m


# ----------------------------------------------------------------------------
# Generation-aware VMEM planning
# ----------------------------------------------------------------------------
_VMEM_PLAN = None


def _vmem_plan():
    """Returns (vmem_limit_bytes, operand_tile_budget_bytes, tm_cap)."""
    global _VMEM_PLAN
    if _VMEM_PLAN is None:
        try:
            info = pltpu.get_tpu_info()
            cap = int(getattr(info, "vmem_capacity_bytes", 0)) or 64 * 1024 * 1024
        except Exception:
            cap = 64 * 1024 * 1024          # conservative (v7x per-TC VMEM)
        limit = int(cap * 0.78)             # ~100 MiB on v5e/v6e, ~50 MiB on v7x
        budget = int(cap * 0.60)            # operand tiles incl. double buffers
        tm_cap = 1024 if cap >= 100 * 1024 * 1024 else 512
        _VMEM_PLAN = (limit, budget, tm_cap)
    return _VMEM_PLAN


# ----------------------------------------------------------------------------
# Kernels
# ----------------------------------------------------------------------------
def _adapt_kernel_resident(x_ref, w_ref, b_ref, o_ref):
    # x_ref: (tm, S)  w_ref: (S, tn)  b_ref: (1, tn) f32  o_ref: (tm, tn)
    acc = jnp.dot(
        x_ref[...].astype(w_ref.dtype),
        w_ref[...],
        preferred_element_type=jnp.float32,
    )
    o_ref[...] = (acc + b_ref[...]).astype(o_ref.dtype)


def _adapt_kernel_ktiled(x_ref, w_ref, b_ref, o_ref, acc_ref, *, S, tk):
    # Grid: (i over M, j over N, k over K) with k innermost ("arbitrary").
    k = pl.program_id(2)

    @pl.when(k == 0)
    def _():
        acc_ref[...] = jnp.zeros_like(acc_ref)

    x = x_ref[...]
    w = w_ref[...]
    if S % tk != 0:
        # Ragged last K block: zero both operand tails so OOB garbage
        # (possibly NaN) never enters the accumulation.
        rem = S - k * tk
        col = jax.lax.broadcasted_iota(jnp.int32, x.shape, 1)
        x = jnp.where(col < rem, x, jnp.zeros_like(x))
        row = jax.lax.broadcasted_iota(jnp.int32, w.shape, 0)
        w = jnp.where(row < rem, w, jnp.zeros_like(w))

    acc_ref[...] += jnp.dot(
        x.astype(w.dtype), w, preferred_element_type=jnp.float32
    )

    @pl.when(k == pl.num_programs(2) - 1)
    def _():
        o_ref[...] = (acc_ref[...] + b_ref[...]).astype(o_ref.dtype)


# ----------------------------------------------------------------------------
# Tile selection
# ----------------------------------------------------------------------------
def _choose_tiles(M, S, T_pad, x_itemsize, w_itemsize, budget, tm_cap):
    out_itemsize = x_itemsize

    # N tile: a multiple of 128 dividing T_pad, at most 512 columns.
    if T_pad <= 512:
        tn = T_pad
    elif T_pad % 512 == 0:
        tn = 512
    elif T_pad % 256 == 0:
        tn = 256
    else:
        tn = 128

    tm_min = _round_up(M, _SUBLANE) if M < 128 else 128

    def usage(tm, tk):
        invariant_wb = (tk == S) and (tn == T_pad)   # Buffered(1) on w/b
        wb_bufs = 1 if invariant_wb else 2
        u = (wb_bufs * (tk * tn * w_itemsize + tn * 4)   # weight + f32 bias
             + 2 * tm * tk * x_itemsize                  # x tile (double buf)
             + 2 * tm * tn * out_itemsize)               # out tile (double buf)
        if tk != S:
            u += tm * tn * 4                             # f32 accumulator
        return u

    # K tile: keep full S resident when it fits; else stream 128-aligned chunks.
    tk = S
    if usage(tm_min, S) > budget:
        for cand in (2048, 1024, 512, 256, 128):
            if cand < S:
                tk = cand
                if usage(tm_min, cand) <= budget:
                    break

    # M tile: largest 128-aligned tile (powers of two x 128) that fits.
    tm = tm_min
    if M >= 128:
        cap = min(tm_cap, _round_up(M, 128))
        cand = 128
        while cand * 2 <= cap and usage(cand * 2, tk) <= budget:
            cand *= 2
        tm = cand

    return tm, tk, tn


# ----------------------------------------------------------------------------
# Pallas-backed y = x @ w + b    (w: [S, T_pad], b: [1, T_pad] f32)
# ----------------------------------------------------------------------------
def _linear_pallas(x2d, w, b, *, vmem_budget=None):
    M, S = x2d.shape
    S_w, T_pad = w.shape
    assert S_w == S and b.shape == (1, T_pad)

    limit, budget, tm_cap = _vmem_plan()
    if vmem_budget is not None:
        budget = vmem_budget

    x_itemsize = jnp.dtype(x2d.dtype).itemsize
    w_itemsize = jnp.dtype(w.dtype).itemsize

    tm, tk, tn = _choose_tiles(M, S, T_pad, x_itemsize, w_itemsize, budget, tm_cap)

    nm = pl.cdiv(M, tm)
    nn = T_pad // tn
    nk = pl.cdiv(S, tk)

    # Ensure >= 2 parallel grid steps so v7x's second TensorCore isn't idle.
    if nm * nn == 1 and M >= 256:
        tm = _round_up(pl.cdiv(M, 2), 128)
        nm = pl.cdiv(M, tm)

    cost = pl.CostEstimate(
        flops=2 * M * S * T_pad,
        transcendentals=0,
        bytes_accessed=(nn * M * S * x_itemsize
                        + nm * (S * T_pad * w_itemsize + T_pad * 4)
                        + M * T_pad * x_itemsize),
    )

    out_shape = jax.ShapeDtypeStruct((M, T_pad), x2d.dtype)

    if nk == 1:
        # Grid-invariant weight/bias (nn == 1): single-buffer them.
        wb_mode = dict(pipeline_mode=pl.Buffered(1)) if nn == 1 else {}
        grid = (nm, nn)
        in_specs = [
            pl.BlockSpec((tm, S), lambda i, j: (i, 0)),
            pl.BlockSpec((S, tn), lambda i, j: (0, j), **wb_mode),
            pl.BlockSpec((1, tn), lambda i, j: (0, j), **wb_mode),
        ]
        out_specs = pl.BlockSpec((tm, tn), lambda i, j: (i, j))
        kernel = _adapt_kernel_resident
        scratch = []
        dims = ("parallel", "parallel")
    else:
        grid = (nm, nn, nk)
        in_specs = [
            pl.BlockSpec((tm, tk), lambda i, j, k: (i, k)),
            pl.BlockSpec((tk, tn), lambda i, j, k: (k, j)),
            pl.BlockSpec((1, tn), lambda i, j, k: (0, j)),
        ]
        out_specs = pl.BlockSpec((tm, tn), lambda i, j, k: (i, j))
        kernel = functools.partial(_adapt_kernel_ktiled, S=S, tk=tk)
        scratch = [pltpu.VMEM((tm, tn), jnp.float32)]
        dims = ("parallel", "parallel", "arbitrary")

    return pl.pallas_call(
        kernel,
        out_shape=out_shape,
        grid_spec=pltpu.PrefetchScalarGridSpec(
            num_scalar_prefetch=0,
            grid=grid,
            in_specs=in_specs,
            out_specs=out_specs,
            scratch_shapes=scratch,
        ),
        compiler_params=pltpu.CompilerParams(
            dimension_semantics=dims,
            vmem_limit_bytes=limit,
        ),
        cost_estimate=cost,
    )(x2d, w, b)


# ----------------------------------------------------------------------------
# AdaptiveInputLayer wrapper (JAX-side "module")
# ----------------------------------------------------------------------------
class AdaptiveInputLayerPallas:
    """Adapts embeddings of arbitrary trailing dimension to `target_dim`.

    Adaptation layers (Linear(source_dim, target_dim)) are created on demand
    with deterministic initialization matching nn.Linear's default
    U(-1/sqrt(source_dim), 1/sqrt(source_dim)) for weight and bias.  Weights
    are cached pre-transposed [S, T_pad] with target_dim zero-padded to a
    multiple of 128 (lane-dense output stores / full MXU N tiles).

    Precision note: weights are cached in `weight_dtype` (default bfloat16 —
    x is cast to the same dtype before the MXU, accumulation is f32, bias is
    added in f32).  Results therefore differ from a pure fp32 nn.Linear by
    bf16 quantization (~1e-2 abs for O(1) activations); pass
    weight_dtype=jnp.float32 for full-fidelity math.
    """

    def __init__(self, target_dim: int, cache_size: int = 10, seed: int = 0,
                 weight_dtype=jnp.bfloat16):
        self.target_dim = target_dim
        self.target_dim_padded = _round_up(target_dim, _LANE)
        self.cache_size = cache_size
        self.weight_dtype = weight_dtype
        # Matches the PyTorch reference: adaptation layers persist for the
        # lifetime of the module (only shape_cache honors cache_size).
        self.adaptation_layers = {}   # source_dim -> (w [S,Tp], b f32 [1,Tp])
        self.shape_cache = {}
        self.cache_hits = 0
        self.cache_misses = 0
        self._seed = seed

    def _add_adaptation(self, source_dim: int):
        if source_dim in self.adaptation_layers:
            return
        key = jax.random.PRNGKey(self._seed + source_dim)
        kw, kb = jax.random.split(key)
        bound = 1.0 / math.sqrt(source_dim)
        # PyTorch stores W as [target_dim, source_dim]; we store the transpose.
        w_t = jax.random.uniform(
            kw, (self.target_dim, source_dim), jnp.float32, -bound, bound
        )
        w = jnp.transpose(w_t)                                   # [S, T]
        b = jax.random.uniform(
            kb, (1, self.target_dim), jnp.float32, -bound, bound
        )
        pad_t = self.target_dim_padded - self.target_dim
        if pad_t:
            w = jnp.pad(w, ((0, 0), (0, pad_t)))                 # zero cols
            b = jnp.pad(b, ((0, 0), (0, pad_t)))
        w = w.astype(self.weight_dtype)
        self.adaptation_layers[source_dim] = (w, b)

    def __call__(self, x: jnp.ndarray) -> jnp.ndarray:
        # Host-side cache bookkeeping (the PyTorch RLock has no device-side
        # equivalent; Python calls are already serialized here).
        input_shape = tuple(x.shape)
        if input_shape in self.shape_cache:
            source_dim = self.shape_cache[input_shape]
            self.cache_hits += 1
        else:
            source_dim = int(x.shape[-1])
            if len(self.shape_cache) >= self.cache_size:
                oldest = next(iter(self.shape_cache))
                del self.shape_cache[oldest]
            self.shape_cache[input_shape] = source_dim
            self.cache_misses += 1
            self._add_adaptation(source_dim)

        w, b = self.adaptation_layers[source_dim]

        lead_shape = x.shape[:-1]
        x2d = x.reshape(-1, source_dim)
        y2d = _linear_pallas(x2d, w, b)
        if self.target_dim_padded != self.target_dim:
            y2d = y2d[:, : self.target_dim]
        return y2d.reshape(*lead_shape, self.target_dim)


# ----------------------------------------------------------------------------
# Demo / self-test
# ----------------------------------------------------------------------------
if __name__ == "__main__":
    target_dim = 32
    layer = AdaptiveInputLayerPallas(target_dim=target_dim, seed=0)

    # x of shape [batch=2, seq=8, source_dim=48] (feature-last, like PyTorch).
    key = jax.random.PRNGKey(0)
    x = jax.random.normal(key, (2, 8, 48), dtype=jnp.float32)

    y = jax.block_until_ready(layer(x))
    assert y.shape == (2, 8, target_dim), y.shape

    # Reference check (same bf16-quantized operands, f32 math).
    w, b = layer.adaptation_layers[48]
    x_q = x.reshape(-1, 48).astype(jnp.bfloat16).astype(jnp.float32)
    y_ref = x_q @ w[:, :target_dim].astype(jnp.float32) + b[:, :target_dim]
    y_ref = y_ref.reshape(2, 8, target_dim)
    assert jnp.allclose(y, y_ref, atol=1e-2, rtol=1e-2), float(
        jnp.max(jnp.abs(y - y_ref))
    )

    # Second call with a different source_dim exercises on-demand adaptation.
    x2 = jax.random.normal(jax.random.PRNGKey(1), (2, 8, 24), dtype=jnp.float32)
    y2 = jax.block_until_ready(layer(x2))
    assert y2.shape == (2, 8, target_dim)

    # Repeat call exercises the shape cache (hit path).
    y3 = jax.block_until_ready(layer(x))
    assert layer.cache_hits >= 1 and layer.cache_misses >= 2

    # Exercise the K/N-tiled path (ragged M, ragged K, N tiling) by forcing a
    # tiny VMEM budget; validate against a dense reference.
    km, kwt, kbt = jax.random.split(jax.random.PRNGKey(2), 3)
    Mt, St, Tt = 200, 600, 768      # Tt already a multiple of 128
    xt = jax.random.normal(km, (Mt, St), jnp.float32)
    wt = (jax.random.normal(kwt, (St, Tt), jnp.float32) * 0.02).astype(jnp.bfloat16)
    bt = jax.random.normal(kbt, (1, Tt), jnp.float32) * 0.02
    yt = jax.block_until_ready(
        _linear_pallas(xt, wt, bt, vmem_budget=1 * 1024 * 1024)
    )
    yt_ref = (xt.astype(jnp.bfloat16).astype(jnp.float32)
              @ wt.astype(jnp.float32) + bt)
    assert yt.shape == (Mt, Tt)
    assert jnp.allclose(yt, yt_ref, atol=5e-2, rtol=5e-2), float(
        jnp.max(jnp.abs(yt - yt_ref))
    )

    print("KERNEL_OK")
</pallas_src>

<mosaic_0001>
module attributes {stable_mosaic.version = 11 : i64} {
  func.func @_adapt_kernel_resident(%arg0: i32, %arg1: i32, %arg2: memref<16x48xf32, #tpu.memory_space<vmem>>, %arg3: memref<48x128xbf16, #tpu.memory_space<vmem>>, %arg4: memref<1x128xf32, #tpu.memory_space<vmem>>, %arg5: memref<16x128xf32, #tpu.memory_space<vmem>>) attributes {dimension_semantics = [#tpu.dimension_semantics<parallel>, #tpu.dimension_semantics<parallel>], iteration_bounds = array<i64: 1, 1>, scalar_prefetch = 0 : i64, scratch_operands = 0 : i64, tpu.core_type = #tpu.core_type<tc>, window_params = [{transform_indices = @transform_0, window_bounds = array<i64: 16, 48>}, {pipeline_mode = #tpu.pipeline_mode<synchronous>, transform_indices = @transform_1, window_bounds = array<i64: 48, 128>}, {pipeline_mode = #tpu.pipeline_mode<synchronous>, transform_indices = @transform_2, window_bounds = array<i64: 1, 128>}, {transform_indices = @transform_3, window_bounds = array<i64: 16, 128>}]} {
    %c0 = arith.constant 0 : index
    %c0_0 = arith.constant 0 : index
    %0 = vector.load %arg2[%c0, %c0_0] : memref<16x48xf32, #tpu.memory_space<vmem>>, vector<16x48xf32>
    %1 = arith.truncf %0 : vector<16x48xf32> to vector<16x48xbf16>
    %c0_1 = arith.constant 0 : index
    %c0_2 = arith.constant 0 : index
    %2 = vector.load %arg3[%c0_1, %c0_2] : memref<48x128xbf16, #tpu.memory_space<vmem>>, vector<48x128xbf16>
    %cst = arith.constant dense<0.000000e+00> : vector<16x128xf32>
    %3 = tpu.matmul %1, %2, %cst {dimension_numbers = #tpu.dot_dimension_numbers<[1], [0], [0], [1], [0, 0, 1, 1], [], []>} : vector<16x48xbf16>, vector<48x128xbf16>, vector<16x128xf32> -> vector<16x128xf32>
    %c0_3 = arith.constant 0 : index
    %c0_4 = arith.constant 0 : index
    %4 = vector.load %arg4[%c0_3, %c0_4] : memref<1x128xf32, #tpu.memory_space<vmem>>, vector<1x128xf32>
    %5 = vector.broadcast %4 : vector<1x128xf32> to vector<16x128xf32>
    %6 = arith.addf %3, %5 : vector<16x128xf32>
    %c0_5 = arith.constant 0 : index
    %c0_6 = arith.constant 0 : index
    %7 = vector.load %arg5[%c0_5, %c0_6] : memref<16x128xf32, #tpu.memory_space<vmem>>, vector<16x128xf32>
    tpu.vector_store %arg5[%c0_5, %c0_6], %6 {strides = array<i32>} : memref<16x128xf32, #tpu.memory_space<vmem>>, vector<16x128xf32>,
    return
  }
  func.func @transform_0(%arg0: i32, %arg1: i32) -> (i32, i32) {
    %c0_i32 = arith.constant 0 : i32
    %c0_i32_0 = arith.constant 0 : i32
    return %arg0, %c0_i32 : i32, i32
  }
  func.func @transform_1(%arg0: i32, %arg1: i32) -> (i32, i32) {
    %c0_i32 = arith.constant 0 : i32
    %c0_i32_0 = arith.constant 0 : i32
    return %c0_i32, %arg1 : i32, i32
  }
  func.func @transform_2(%arg0: i32, %arg1: i32) -> (i32, i32) {
    %c0_i32 = arith.constant 0 : i32
    %c0_i32_0 = arith.constant 0 : i32
    return %c0_i32, %arg1 : i32, i32
  }
  func.func @transform_3(%arg0: i32, %arg1: i32) -> (i32, i32) {
    %c0_i32 = arith.constant 0 : i32
    return %arg0, %arg1 : i32, i32
  }
}

</mosaic_0001>

<llo_original>
// kernel: tpu_custom_call.1
$region0: #{tpu_custom_call.1}
  #allocation0 [shape = 'u32[]', space=smem, size = 0x4, offset = 0x4, fixed_abs, tag = 'smem constant byte address 0x4 - core index']
  #allocation1 [shape = 'u32[144,128]{1,0:T(1,128)}', space=vmem, size = 0x12000, scoped, tag = 'internal scratch']
  %s0 = inlined_call_operand.hbm [shape: f32[16,48], index: 0, kind: input, shape index: {}]
  %s1 = inlined_call_operand.hbm [shape: bf16[48,128], index: 1, kind: input, shape index: {}]
  %s2 = inlined_call_operand.vmem [shape: f32[1,128], index: 2, kind: input, shape index: {}]
  %s3 = inlined_call_operand.hbm [shape: f32[16,128], index: 3, kind: output, shape index: {}]
  %s4 = sld [smem:[#allocation0]]
  $region30: #{tpu_custom_call.1} parent=0
    _
  %s6 = ssub.s32 1, %s4
  %s7 = scalar_select 0, %s6, %s4
  $region1: #{tpu_custom_call.1} parent=0
    #allocation2 [shape = 'u8[8192]{0}', space=vmem, size = 0x2000, scoped, tag = 'input window, operand 0, single buffered']
    #allocation3 [shape = 's32[1]{0}', space=sflag, size = 0x4, scoped, tag = 'scoped memory for tpu_custom_call.1']
    #allocation4 [shape = 's32[1]{0}', space=sflag, size = 0x4, scoped, tag = 'scoped memory for tpu_custom_call.1']
    #allocation5 [shape = 'u8[12288]{0}', space=vmem, size = 0x3000, scoped, tag = 'input window, operand 1, single buffered']
    #allocation6 [shape = 's32[1]{0}', space=sflag, size = 0x4, scoped, tag = 'scoped memory for tpu_custom_call.1']
    #allocation7 [shape = 'u8[8192]{0}', space=vmem, size = 0x2000, scoped, tag = 'output window, operand 0, single buffered']
    %8 = vsyncpa [#allocation3], 0
    %9 = vsyncpa [#allocation6], 0
    %10 = vsyncpa [#allocation4], 0
    // Predicated region
    $region2: #{tpu_custom_call.1} parent=1 // pred_check
      _
    $region3: #{tpu_custom_call.1} parent=1 // pred_check_branch
      %12 = sbr.rel (0) target = $region5
    $region4: #{tpu_custom_call.1} parent=1 // pred_region
      %s14 = ssub.s32 256, 256
      %15 = vsyncadd [#allocation3], %s14
      %s16 = sshll.u32 [#allocation2], 4
      %s17 = int_to_ptr.vmem [resolvable:$true] %s16
      %22 = dma.hbm_to_vmem [thread:$0]  %s0, 256, %s17, [#allocation3], 128, 128, 8
    $region5: #{tpu_custom_call.1} parent=1 // pred_fallthru
      _
    // Predicated region
    $region6: #{tpu_custom_call.1} parent=1 // pred_check
      _
    $region7: #{tpu_custom_call.1} parent=1 // pred_check_branch
      %24 = sbr.rel (0) target = $region9
    $region8: #{tpu_custom_call.1} parent=1 // pred_region
      %s26 = ssub.s32 384, 384
      %27 = vsyncadd [#allocation6], %s26
      %s28 = sshll.u32 [#allocation5], 4
      %s29 = int_to_ptr.vmem [resolvable:$true] %s28
      %34 = dma.hbm_to_vmem [thread:$0]  %s1, 384, %s29, [#allocation6], 64, 64, 4
    $region9: #{tpu_custom_call.1} parent=1 // pred_fallthru
      _
    // Predicated region
    $region10: #{tpu_custom_call.1} parent=1 // pred_check
      _
    $region11: #{tpu_custom_call.1} parent=1 // pred_check_branch
      %36 = sbr.rel (0) target = $region13
    $region12: #{tpu_custom_call.1} parent=1 // pred_region
      _
    $region13: #{tpu_custom_call.1} parent=1 // pred_fallthru
      _
    // Predicated region
    $region14: #{tpu_custom_call.1} parent=1 // pred_check
      _
    $region15: #{tpu_custom_call.1} parent=1 // pred_check_branch
      %38 = sbr.rel (0) target = $region17
    $region16: #{tpu_custom_call.1} parent=1 // pred_region
      %39 = dma.done [#allocation3], 256
    $region17: #{tpu_custom_call.1} parent=1 // pred_fallthru
      _
    // Predicated region
    $region18: #{tpu_custom_call.1} parent=1 // pred_check
      _
    $region19: #{tpu_custom_call.1} parent=1 // pred_check_branch
      %41 = sbr.rel (0) target = $region21
    $region20: #{tpu_custom_call.1} parent=1 // pred_region
      %42 = dma.done [#allocation6], 384
    $region21: #{tpu_custom_call.1} parent=1 // pred_fallthru
      _
    %v44 = vld [vmem:[#allocation2] sm:$0xff]
    %v45 = vld [vmem:[#allocation2 + $0x8] sm:$0xff]
    %v46 = vpack.c.bf16 %v45, %v44
    %v47 = vld [vmem:[#allocation5] sm:$0xf]
    %v48 = vld [vmem:[#allocation5 + $0x4] sm:$0xf]
    %v49 = vld [vmem:[#allocation5 + $0x8] sm:$0xf]
    %v50 = vld [vmem:[#allocation5 + $0xc] sm:$0xf]
    %v51 = vld [vmem:[#allocation5 + $0x10] sm:$0xf]
    %v52 = vld [vmem:[#allocation5 + $0x14] sm:$0xf]
    %v53 = vld [vmem:[%s2] sm:$0x1]
    %v55 = vlaneseq
    %v56 = vshrl.u32 %v55, 7
    %v57 = vsub.s32 0, %v56
    %v58 = vrot.slane %v53, %v57
    %v66 = vunpack.c.l.b16 %v47
    %v67 = vunpack.c.l.b16 %v48
    %v68 = vunpack.c.l.b16 %v49
    %v69 = vunpack.c.l.b16 %v50
    %v70 = vunpack.c.l.b16 %v51
    %v71 = vunpack.c.l.b16 %v52
    %v72 = vpack.c.b16 %v67, %v66
    %v73 = vpack.c.b16 %v69, %v68
    %v74 = vpack.c.b16 %v71, %v70
    %vm78 = vcmask 392192
    %v80 = vsel %vm78, %v46, 0
    %82 = vmatprep.subr.bf16.mxu0 0
    %83 = vmatpush1.bf16.msra.mxu0 %v72
    %84 = vmatprep.subr.bf16.mxu0 0
    %85 = vmatpush1.bf16.msra.mxu0 %v73
    %86 = vmatprep.subr.bf16.mxu0 0
    %87 = vmatpush1.bf16.msra.mxu0 %v74
    %88 = vmatprep.subr.bf16.mxu0 0
    %89 = vmatpush1.bf16.msra.mxu0 0
    %90 = vmatprep.subr.bf16.mxu0 0
    %91 = vmatpush1.bf16.msra.mxu0 0
    %92 = vmatprep.subr.bf16.mxu0 0
    %93 = vmatpush1.bf16.msra.mxu0 0
    %94 = vmatprep.subr.bf16.mxu0 0
    %95 = vmatpush1.bf16.msra.mxu0 0
    %96 = vmatprep.subr.bf16.mxu0 0
    %97 = vmatpush1.bf16.msra.mxu0 0
    %98 = vmatprep.subr.bf16.mxu0 0
    %99 = vmatpush1.bf16.msra.mxu0 0
    %100 = vmatprep.subr.bf16.mxu0 0
    %101 = vmatpush1.bf16.msra.mxu0 0
    %102 = vmatprep.subr.bf16.mxu0 0
    %103 = vmatpush1.bf16.msra.mxu0 0
    %104 = vmatprep.subr.bf16.mxu0 0
    %105 = vmatpush1.bf16.msra.mxu0 0
    %106 = vmatprep.subr.bf16.mxu0 0
    %107 = vmatpush1.bf16.msra.mxu0 0
    %108 = vmatprep.subr.bf16.mxu0 0
    %109 = vmatpush1.bf16.msra.mxu0 0
    %110 = vmatprep.subr.bf16.mxu0 0
    %111 = vmatpush1.bf16.msra.mxu0 0
    %112 = vmatprep.subr.bf16.mxu0 0
    %113 = vmatpush1.bf16.msra.mxu0 0
    %114 = vmatprep.mubr.bf16.mxu0 0
    %115 = vmatmul.mubr.bf16.gmra.mrb[0].mxu0 %v80
    %v116 = vpop.f32.mrb[0].mxu0
    %v117 = vadd.f32 %v58, %v116
    %v118 = vpop.f32.mrb[0].mxu0
    %v119 = vpop.f32.mrb[0].mxu0
    %v120 = vadd.f32 %v58, %v119
    %v121 = vpop.f32.mrb[0].mxu0
    %122 = vdwg.mxu0
    %123 = vst [vmem:[#allocation7] sm:$0xff] %v117
    %124 = vst [vmem:[#allocation7 + $0x8] sm:$0xff] %v120
    // Predicated region
    $region22: #{tpu_custom_call.1} parent=1 // pred_check
      _
    $region23: #{tpu_custom_call.1} parent=1 // pred_check_branch
      %126 = sbr.rel (0) target = $region25
    $region24: #{tpu_custom_call.1} parent=1 // pred_region
      %s128 = ssub.s32 256, 256
      %129 = vsyncadd [#allocation4], %s128
      %s130 = sshll.u32 [#allocation7], 4
      %s131 = int_to_ptr.vmem [resolvable:$true] %s130
      %136 = dma.vmem_to_hbm [thread:$0]  %s131, 256, %s3, [#allocation4], 128, 128, 8
    $region25: #{tpu_custom_call.1} parent=1 // pred_fallthru
      _
    // Predicated region
    $region26: #{tpu_custom_call.1} parent=1 // pred_check
      _
    $region27: #{tpu_custom_call.1} parent=1 // pred_check_branch
      %138 = sbr.rel (0) target = $region29
    $region28: #{tpu_custom_call.1} parent=1 // pred_region
      %139 = dma.done [#allocation4], 256
    $region29: #{tpu_custom_call.1} parent=1 // pred_fallthru
      _
    %140 = vsyncpa [#allocation3], 1
    %141 = vsyncpa [#allocation6], 1
    %142 = vsyncpa [#allocation4], 1

</llo_original>
